<compile_context>
chip_gen: v6e
topology: v6e:2x2x1
jax: 0.10.0
libtpu: 0.0.40
codegen_flags: <defaults>
</compile_context>

<pallas_src>
import jax
import jax.numpy as jnp
from jax.experimental import pallas as pl
from jax.experimental.pallas import tpu as pltpu

# ---- synthetic model config (mirrors the PyTorch module's __init__) ----------
POOLED_C  = 32          # pooled_feature_channel
GRIDLOC_C = 16          # gridloc_feature_channel
GRID_FCS  = [32, 32]    # model_cfg.VG_SHARED_MODEL.GRID_FCS
POOL_FCS  = [64, 32]    # model_cfg.VG_SHARED_MODEL.POOL_FCS
CONCAT    = True        # model_cfg.VG_SHARED_MODEL.CONCAT_POOL_FEATURES
BN_EPS    = 1e-5

POOL_OUT = POOL_FCS[-1]   # 32 : pool branch final channels
GRID_OUT = GRID_FCS[-1]   # 32 : gridloc branch final channels

# Set to jnp.bfloat16 to run the three matmuls at native MXU rate (f32
# accumulate).  Default f32 keeps the kernel numerically faithful to the
# eval-mode PyTorch module.
MXU_DTYPE = jnp.float32

FUSED_ORDER = ['w0p', 'w0g', 'b0', 'w1', 'b1', 'wf']


def _choose_tm(M, min_steps=2):
    """Largest row tile that still gives >= min_steps grid steps (pipelining /
    v7x two-core sharding); fall back to the 8-row minimum sublane tile."""
    for tm in (2048, 1024, 512, 256, 128, 64, 32, 16, 8):
        if pl.cdiv(M, tm) >= min_steps:
            return tm
    return 8


def _block_diag(a, b):
    ra, ca = a.shape
    rb, cb = b.shape
    out = jnp.zeros((ra + rb, ca + cb), a.dtype)
    out = out.at[:ra, :ca].set(a)
    out = out.at[ra:, ca:].set(b)
    return out


def fuse_params(params, mxu_dtype=MXU_DTYPE):
    """Fold the two MLP branches into one block-diagonal MLP and fold the
    (eval-mode) BatchNorm scales into the preceding Linear weights.  Done once
    outside the kernel.  Pool branch occupies the leading channels."""
    w0 = _block_diag(params['wp0'] * params['ps0'],      # column-wise BN scale fold
                     params['wg0'] * params['gs0'])      # (48, 96)
    b0 = jnp.concatenate([params['pb0'], params['gb0']], axis=-1)   # (1, 96)
    w1 = _block_diag(params['wp1'] * params['ps1'],
                     params['wg1'] * params['gs1'])      # (96, 64)
    b1 = jnp.concatenate([params['pb1'], params['gb1']], axis=-1)   # (1, 64)
    wf = _block_diag(params['wpf'], params['wgf'])       # (64, 64)
    return {
        'w0p': w0[:POOLED_C].astype(mxu_dtype),          # (32, 96) pool rows
        'w0g': w0[POOLED_C:].astype(mxu_dtype),          # (16, 96) gridloc rows
        'b0': b0,
        'w1': w1.astype(mxu_dtype),
        'b1': b1,
        'wf': wf.astype(mxu_dtype),
    }


def _gridpool_kernel(pooled_ref, gridloc_ref,
                     w0p, w0g, b0, w1, b1, wf,
                     out_ref):
    xp = pooled_ref[...].astype(jnp.float32)     # (TM, 32)
    xg = gridloc_ref[...].astype(jnp.float32)    # (TM, 16)
    mxu_dt = w0p.dtype

    # Fused [pool | gridloc] MLP, BN scale already folded into the weights:
    #   Linear -> (+bias) ReLU -> Linear -> (+bias) ReLU -> Linear
    # Layer 0 split over the two inputs avoids the (TM,48) lane concat.
    h = (jnp.dot(xp.astype(mxu_dt), w0p[...], preferred_element_type=jnp.float32) +
         jnp.dot(xg.astype(mxu_dt), w0g[...], preferred_element_type=jnp.float32))  # (TM, 96)
    h = jnp.maximum(h + b0[...], 0.0)
    h = jnp.dot(h.astype(mxu_dt), w1[...], preferred_element_type=jnp.float32)      # (TM, 64)
    h = jnp.maximum(h + b1[...], 0.0)
    h = jnp.dot(h.astype(mxu_dt), wf[...], preferred_element_type=jnp.float32)      # (TM, 64)

    pool_x = h[:, :POOL_OUT]                     # (TM, 32)
    grid_x = h[:, POOL_OUT:]                     # (TM, 32)

    # F.sigmoid, exact, single EUP op: sigmoid(x) = 0.5*tanh(0.5*x) + 0.5.
    grid_weights = 0.5 * jnp.tanh(0.5 * grid_x) + 0.5
    gated = pool_x * grid_weights                # (TM, 32)

    if CONCAT:
        # Single (TM, 64) store (pooled passthrough | gated features).
        out_ref[...] = jnp.concatenate([xp, gated], axis=-1).astype(out_ref.dtype)
    else:
        out_ref[...] = gated.astype(out_ref.dtype)


def grid_pool_loc_sigmoid(pooled_features, gridloc_features, fused_params):
    """pooled_features: (n, grid**3, POOLED_C); gridloc_features: (n, grid**3, GRIDLOC_C)."""
    n, g3, cp = pooled_features.shape
    _, _, cg = gridloc_features.shape
    M = n * g3
    cout = (POOL_OUT + cp) if CONCAT else POOL_OUT

    tm = _choose_tm(M)

    pooled2d = pooled_features.reshape(M, cp)
    gridloc2d = gridloc_features.reshape(M, cg)

    weight_args = [fused_params[k] for k in FUSED_ORDER]

    in_specs = [pl.BlockSpec((tm, cp), lambda i: (i, 0)),
                pl.BlockSpec((tm, cg), lambda i: (i, 0))]
    # Weights/biases are tiny; keep each fully VMEM-resident across all steps.
    in_specs += [pl.BlockSpec(w.shape, lambda i: (0, 0)) for w in weight_args]

    out2d = pl.pallas_call(
        _gridpool_kernel,
        out_shape=jax.ShapeDtypeStruct((M, cout), jnp.float32),
        grid_spec=pltpu.PrefetchScalarGridSpec(
            num_scalar_prefetch=0,
            grid=(pl.cdiv(M, tm),),          # ragged last block is masked by Pallas
            in_specs=in_specs,
            out_specs=pl.BlockSpec((tm, cout), lambda i: (i, 0)),
        ),
        compiler_params=pltpu.CompilerParams(dimension_semantics=("parallel",)),
    )(pooled2d, gridloc2d, *weight_args)

    return out2d.reshape(n, g3, cout)


def make_params(key):
    def xavier(k, shape):  # shape = (fan_in, fan_out), xavier_normal_
        std = (2.0 / (shape[0] + shape[1])) ** 0.5
        return std * jax.random.normal(k, shape, jnp.float32)

    def bn_fold(k, c):
        k1, k2, k3, k4 = jax.random.split(k, 4)
        gamma = 1.0 + 0.1 * jax.random.normal(k1, (1, c), jnp.float32)
        beta = 0.1 * jax.random.normal(k2, (1, c), jnp.float32)
        mean = 0.1 * jax.random.normal(k3, (1, c), jnp.float32)
        var = jax.random.uniform(k4, (1, c), jnp.float32, minval=0.5, maxval=1.5)
        scale = gamma / jnp.sqrt(var + BN_EPS)
        shift = beta - mean * scale
        return scale, shift

    keys = jax.random.split(key, 10)
    p = {}
    # gridloc path
    p['wg0'] = xavier(keys[0], (GRIDLOC_C, GRID_FCS[0]))
    p['gs0'], p['gb0'] = bn_fold(keys[1], GRID_FCS[0])
    p['wg1'] = xavier(keys[2], (GRID_FCS[0], GRID_FCS[1]))
    p['gs1'], p['gb1'] = bn_fold(keys[3], GRID_FCS[1])
    p['wgf'] = xavier(keys[4], (GRID_FCS[1], GRID_FCS[1]))
    # pool path
    p['wp0'] = xavier(keys[5], (POOLED_C, POOL_FCS[0]))
    p['ps0'], p['pb0'] = bn_fold(keys[6], POOL_FCS[0])
    p['wp1'] = xavier(keys[7], (POOL_FCS[0], POOL_FCS[1]))
    p['ps1'], p['pb1'] = bn_fold(keys[8], POOL_FCS[1])
    p['wpf'] = xavier(keys[9], (POOL_FCS[1], POOL_FCS[1]))
    return p


def reference(pooled, gridloc, p):
    """Unfused pure-JAX mirror of the PyTorch forward (eval mode)."""
    n, g3, _ = pooled.shape
    M = n * g3
    xg = gridloc.reshape(M, -1)
    xp = pooled.reshape(M, -1)
    h = jnp.maximum(xg @ p['wg0'] * p['gs0'] + p['gb0'], 0.0)
    h = jnp.maximum(h @ p['wg1'] * p['gs1'] + p['gb1'], 0.0)
    gx = h @ p['wgf']
    h = jnp.maximum(xp @ p['wp0'] * p['ps0'] + p['pb0'], 0.0)
    h = jnp.maximum(h @ p['wp1'] * p['ps1'] + p['pb1'], 0.0)
    px = h @ p['wpf']
    out = (px * jax.nn.sigmoid(gx)).reshape(n, g3, -1)
    if CONCAT:
        out = jnp.concatenate([pooled, out], axis=-1)
    return out


if __name__ == "__main__":
    key = jax.random.PRNGKey(0)
    k_p, k_g, k_w, k_p2, k_g2 = jax.random.split(key, 5)

    params = make_params(k_w)
    fused = fuse_params(params)

    RTOL, ATOL = 2e-3, 1e-3

    # Case 1: small shapes consistent with the module (2 ROIs, grid=2 -> 8 pts).
    n, grid = 2, 2
    pooled = jax.random.normal(k_p, (n, grid ** 3, POOLED_C), jnp.float32)
    gridloc = jax.random.normal(k_g, (n, grid ** 3, GRIDLOC_C), jnp.float32)
    out = jax.block_until_ready(grid_pool_loc_sigmoid(pooled, gridloc, fused))
    ref = reference(pooled, gridloc, params)
    assert out.shape == ref.shape, (out.shape, ref.shape)
    assert jnp.allclose(out, ref, rtol=RTOL, atol=ATOL), \
        float(jnp.max(jnp.abs(out - ref)))

    # Case 2: M not a multiple of the tile (37 ROIs, grid=3 -> M=999) to
    # exercise the ragged-last-block path and a larger row tile.
    n2, grid2 = 37, 3
    pooled2 = jax.random.normal(k_p2, (n2, grid2 ** 3, POOLED_C), jnp.float32)
    gridloc2 = jax.random.normal(k_g2, (n2, grid2 ** 3, GRIDLOC_C), jnp.float32)
    out2 = jax.block_until_ready(grid_pool_loc_sigmoid(pooled2, gridloc2, fused))
    ref2 = reference(pooled2, gridloc2, params)
    assert out2.shape == ref2.shape, (out2.shape, ref2.shape)
    assert jnp.allclose(out2, ref2, rtol=RTOL, atol=ATOL), \
        float(jnp.max(jnp.abs(out2 - ref2)))

    print("KERNEL_OK")
</pallas_src>

<mosaic_0001>
module attributes {stable_mosaic.version = 11 : i64} {
  func.func @_gridpool_kernel(%arg0: i32, %arg1: memref<8x32xf32, #tpu.memory_space<vmem>>, %arg2: memref<8x16xf32, #tpu.memory_space<vmem>>, %arg3: memref<32x96xf32, #tpu.memory_space<vmem>>, %arg4: memref<16x96xf32, #tpu.memory_space<vmem>>, %arg5: memref<1x96xf32, #tpu.memory_space<vmem>>, %arg6: memref<96x64xf32, #tpu.memory_space<vmem>>, %arg7: memref<1x64xf32, #tpu.memory_space<vmem>>, %arg8: memref<64x64xf32, #tpu.memory_space<vmem>>, %arg9: memref<8x64xf32, #tpu.memory_space<vmem>>) attributes {dimension_semantics = [#tpu.dimension_semantics<parallel>], iteration_bounds = array<i64: 2>, scalar_prefetch = 0 : i64, scratch_operands = 0 : i64, tpu.core_type = #tpu.core_type<tc>, window_params = [{transform_indices = @transform_0, window_bounds = array<i64: 8, 32>}, {transform_indices = @transform_1, window_bounds = array<i64: 8, 16>}, {pipeline_mode = #tpu.pipeline_mode<synchronous>, transform_indices = @transform_2, window_bounds = array<i64: 32, 96>}, {pipeline_mode = #tpu.pipeline_mode<synchronous>, transform_indices = @transform_3, window_bounds = array<i64: 16, 96>}, {pipeline_mode = #tpu.pipeline_mode<synchronous>, transform_indices = @transform_4, window_bounds = array<i64: 1, 96>}, {pipeline_mode = #tpu.pipeline_mode<synchronous>, transform_indices = @transform_5, window_bounds = array<i64: 96, 64>}, {pipeline_mode = #tpu.pipeline_mode<synchronous>, transform_indices = @transform_6, window_bounds = array<i64: 1, 64>}, {pipeline_mode = #tpu.pipeline_mode<synchronous>, transform_indices = @transform_7, window_bounds = array<i64: 64, 64>}, {transform_indices = @transform_8, window_bounds = array<i64: 8, 64>}]} {
    %c0 = arith.constant 0 : index
    %c0_0 = arith.constant 0 : index
    %0 = vector.load %arg1[%c0, %c0_0] : memref<8x32xf32, #tpu.memory_space<vmem>>, vector<8x32xf32>
    %c0_1 = arith.constant 0 : index
    %c0_2 = arith.constant 0 : index
    %1 = vector.load %arg2[%c0_1, %c0_2] : memref<8x16xf32, #tpu.memory_space<vmem>>, vector<8x16xf32>
    %c0_3 = arith.constant 0 : index
    %c0_4 = arith.constant 0 : index
    %2 = vector.load %arg3[%c0_3, %c0_4] : memref<32x96xf32, #tpu.memory_space<vmem>>, vector<32x96xf32>
    %cst = arith.constant dense<0.000000e+00> : vector<8x96xf32>
    %3 = tpu.matmul %0, %2, %cst {dimension_numbers = #tpu.dot_dimension_numbers<[1], [0], [0], [1], [0, 0, 1, 1], [], []>} : vector<8x32xf32>, vector<32x96xf32>, vector<8x96xf32> -> vector<8x96xf32>
    %c0_5 = arith.constant 0 : index
    %c0_6 = arith.constant 0 : index
    %4 = vector.load %arg4[%c0_5, %c0_6] : memref<16x96xf32, #tpu.memory_space<vmem>>, vector<16x96xf32>
    %cst_7 = arith.constant dense<0.000000e+00> : vector<8x96xf32>
    %5 = tpu.matmul %1, %4, %cst_7 {dimension_numbers = #tpu.dot_dimension_numbers<[1], [0], [0], [1], [0, 0, 1, 1], [], []>} : vector<8x16xf32>, vector<16x96xf32>, vector<8x96xf32> -> vector<8x96xf32>
    %6 = arith.addf %3, %5 : vector<8x96xf32>
    %c0_8 = arith.constant 0 : index
    %c0_9 = arith.constant 0 : index
    %7 = vector.load %arg5[%c0_8, %c0_9] : memref<1x96xf32, #tpu.memory_space<vmem>>, vector<1x96xf32>
    %8 = vector.broadcast %7 : vector<1x96xf32> to vector<8x96xf32>
    %9 = arith.addf %6, %8 : vector<8x96xf32>
    %cst_10 = arith.constant 0.000000e+00 : f32
    %10 = vector.broadcast %cst_10 : f32 to vector<8x96xf32>
    %11 = arith.maximumf %9, %10 : vector<8x96xf32>
    %c0_11 = arith.constant 0 : index
    %c0_12 = arith.constant 0 : index
    %12 = vector.load %arg6[%c0_11, %c0_12] : memref<96x64xf32, #tpu.memory_space<vmem>>, vector<96x64xf32>
    %cst_13 = arith.constant dense<0.000000e+00> : vector<8x64xf32>
    %13 = tpu.matmul %11, %12, %cst_13 {dimension_numbers = #tpu.dot_dimension_numbers<[1], [0], [0], [1], [0, 0, 1, 1], [], []>} : vector<8x96xf32>, vector<96x64xf32>, vector<8x64xf32> -> vector<8x64xf32>
    %c0_14 = arith.constant 0 : index
    %c0_15 = arith.constant 0 : index
    %14 = vector.load %arg7[%c0_14, %c0_15] : memref<1x64xf32, #tpu.memory_space<vmem>>, vector<1x64xf32>
    %15 = vector.broadcast %14 : vector<1x64xf32> to vector<8x64xf32>
    %16 = arith.addf %13, %15 : vector<8x64xf32>
    %cst_16 = arith.constant 0.000000e+00 : f32
    %17 = vector.broadcast %cst_16 : f32 to vector<8x64xf32>
    %18 = arith.maximumf %16, %17 : vector<8x64xf32>
    %c0_17 = arith.constant 0 : index
    %c0_18 = arith.constant 0 : index
    %19 = vector.load %arg8[%c0_17, %c0_18] : memref<64x64xf32, #tpu.memory_space<vmem>>, vector<64x64xf32>
    %cst_19 = arith.constant dense<0.000000e+00> : vector<8x64xf32>
    %20 = tpu.matmul %18, %19, %cst_19 {dimension_numbers = #tpu.dot_dimension_numbers<[1], [0], [0], [1], [0, 0, 1, 1], [], []>} : vector<8x64xf32>, vector<64x64xf32>, vector<8x64xf32> -> vector<8x64xf32>
    %21 = vector.extract_strided_slice %20 {offsets = [0, 0], sizes = [8, 32], strides = [1, 1]} : vector<8x64xf32> to vector<8x32xf32>
    %22 = vector.extract_strided_slice %20 {offsets = [0, 32], sizes = [8, 32], strides = [1, 1]} : vector<8x64xf32> to vector<8x32xf32>
    %cst_20 = arith.constant 5.000000e-01 : f32
    %23 = vector.broadcast %cst_20 : f32 to vector<8x32xf32>
    %24 = arith.mulf %23, %22 : vector<8x32xf32>
    %25 = math.tanh %24 : vector<8x32xf32>
    %cst_21 = arith.constant 5.000000e-01 : f32
    %26 = vector.broadcast %cst_21 : f32 to vector<8x32xf32>
    %27 = arith.mulf %26, %25 : vector<8x32xf32>
    %cst_22 = arith.constant 5.000000e-01 : f32
    %28 = vector.broadcast %cst_22 : f32 to vector<8x32xf32>
    %29 = arith.addf %27, %28 : vector<8x32xf32>
    %30 = arith.mulf %21, %29 : vector<8x32xf32>
    %31 = tpu.concatenate %0, %30 in 1 : vector<8x32xf32>, vector<8x32xf32> -> vector<8x64xf32>
    %c0_23 = arith.constant 0 : index
    %c0_24 = arith.constant 0 : index
    %32 = vector.load %arg9[%c0_23, %c0_24] : memref<8x64xf32, #tpu.memory_space<vmem>>, vector<8x64xf32>
    tpu.vector_store %arg9[%c0_23, %c0_24], %31 {strides = array<i32>} : memref<8x64xf32, #tpu.memory_space<vmem>>, vector<8x64xf32>,
    return
  }
  func.func @transform_0(%arg0: i32) -> (i32, i32) {
    %c0_i32 = arith.constant 0 : i32
    %c0_i32_0 = arith.constant 0 : i32
    return %arg0, %c0_i32 : i32, i32
  }
  func.func @transform_1(%arg0: i32) -> (i32, i32) {
    %c0_i32 = arith.constant 0 : i32
    %c0_i32_0 = arith.constant 0 : i32
    return %arg0, %c0_i32 : i32, i32
  }
  func.func @transform_2(%arg0: i32) -> (i32, i32) {
    %c0_i32 = arith.constant 0 : i32
    %c0_i32_0 = arith.constant 0 : i32
    %c0_i32_1 = arith.constant 0 : i32
    return %c0_i32, %c0_i32_0 : i32, i32
  }
  func.func @transform_3(%arg0: i32) -> (i32, i32) {
    %c0_i32 = arith.constant 0 : i32
    %c0_i32_0 = arith.constant 0 : i32
    %c0_i32_1 = arith.constant 0 : i32
    return %c0_i32, %c0_i32_0 : i32, i32
  }
  func.func @transform_4(%arg0: i32) -> (i32, i32) {
    %c0_i32 = arith.constant 0 : i32
    %c0_i32_0 = arith.constant 0 : i32
    %c0_i32_1 = arith.constant 0 : i32
    return %c0_i32, %c0_i32_0 : i32, i32
  }
  func.func @transform_5(%arg0: i32) -> (i32, i32) {
    %c0_i32 = arith.constant 0 : i32
    %c0_i32_0 = arith.constant 0 : i32
    %c0_i32_1 = arith.constant 0 : i32
    return %c0_i32, %c0_i32_0 : i32, i32
  }
  func.func @transform_6(%arg0: i32) -> (i32, i32) {
    %c0_i32 = arith.constant 0 : i32
    %c0_i32_0 = arith.constant 0 : i32
    %c0_i32_1 = arith.constant 0 : i32
    return %c0_i32, %c0_i32_0 : i32, i32
  }
  func.func @transform_7(%arg0: i32) -> (i32, i32) {
    %c0_i32 = arith.constant 0 : i32
    %c0_i32_0 = arith.constant 0 : i32
    %c0_i32_1 = arith.constant 0 : i32
    return %c0_i32, %c0_i32_0 : i32, i32
  }
  func.func @transform_8(%arg0: i32) -> (i32, i32) {
    %c0_i32 = arith.constant 0 : i32
    %c0_i32_0 = arith.constant 0 : i32
    return %arg0, %c0_i32 : i32, i32
  }
}

</mosaic_0001>

<llo_original>
// kernel: tpu_custom_call.1
$region0: #{tpu_custom_call.1}
  #allocation0 [shape = 'u32[]', space=smem, size = 0x4, offset = 0x4, fixed_abs, tag = 'smem constant byte address 0x4 - core index']
  #allocation1 [shape = 'u32[144,128]{1,0:T(1,128)}', space=vmem, size = 0x12000, scoped, tag = 'internal scratch']
  %s0 = inlined_call_operand.vmem [shape: f32[16,32], index: 0, kind: input, shape index: {}]
  %s1 = inlined_call_operand.vmem [shape: f32[16,16], index: 1, kind: input, shape index: {}]
  %s2 = inlined_call_operand.vmem [shape: f32[32,96], index: 2, kind: input, shape index: {}]
  %s3 = inlined_call_operand.vmem [shape: f32[16,96], index: 3, kind: input, shape index: {}]
  %s4 = inlined_call_operand.vmem [shape: f32[1,96], index: 4, kind: input, shape index: {}]
  %s5 = inlined_call_operand.vmem [shape: f32[96,64], index: 5, kind: input, shape index: {}]
  %s6 = inlined_call_operand.vmem [shape: f32[1,64], index: 6, kind: input, shape index: {}]
  %s7 = inlined_call_operand.vmem [shape: f32[64,64], index: 7, kind: input, shape index: {}]
  %s8 = inlined_call_operand.hbm [shape: f32[16,64], index: 8, kind: output, shape index: {}]
  %s9 = sld [smem:[#allocation0]]
  $region65: #{tpu_custom_call.1} parent=0
    _
  %s11 = ssub.s32 1, %s9
  %s12 = scalar_select 0, %s11, %s9
  $region1: #{tpu_custom_call.1} parent=0
    #allocation2 [shape = 'u8[8192]{0}', space=vmem, size = 0x2000, scoped, tag = 'output window, operand 0']
    #allocation3 [shape = 's32[2]{0}', space=sflag, size = 0x8, scoped, tag = 'scoped memory for tpu_custom_call.1']
    %13 = vsyncpa [#allocation3], 0
    %s14 = scalar_lea.sflag [#allocation3], 1
    %15 = vsyncpa %s14, 0
    loop: start=0, step=1, limit=4
    $region2: #{tpu_custom_call.1} parent=1 // loop_pre_header
      _
    $region3: #{tpu_custom_call.1} parent=1 // loop_header
      %s17 = sphi 0, %s21
      %p18 = scmp.ge.s32.totalorder %s17, 4
      %s27 = sphi 0, %s29
      %s30 = sphi 0, %s27
      %s31 = sphi 0, %s30
      %s47 = sphi 0, %s31
      %s53 = sphi 0, %s55
      %s56 = sphi 0, %s53
      %s57 = sphi 0, %s56
      %s73 = sphi 0, %s57
      %s77 = sphi 0, %s77
      %s79 = sphi 0, %s77
      %s80 = sphi 0, %s79
      %s94 = sphi 0, %s80
      %s98 = sphi 0, %s98
      %s100 = sphi 0, %s98
      %s101 = sphi 0, %s100
      %s115 = sphi 0, %s101
      %s119 = sphi 0, %s119
      %s121 = sphi 0, %s119
      %s122 = sphi 0, %s121
      %s136 = sphi 0, %s122
      %s140 = sphi 0, %s140
      %s142 = sphi 0, %s140
      %s143 = sphi 0, %s142
      %s157 = sphi 0, %s143
      %s161 = sphi 0, %s161
      %s163 = sphi 0, %s161
      %s164 = sphi 0, %s163
      %s178 = sphi 0, %s164
      %s182 = sphi 0, %s182
      %s184 = sphi 0, %s182
      %s185 = sphi 0, %s184
      %s199 = sphi 0, %s185
      %s205 = sphi 0, %s207
      %s208 = sphi 0, %s205
      %s209 = sphi 0, %s208
      %s225 = sphi 0, %s209
    $region4: #{tpu_custom_call.1} parent=1 // loop_header_branch
      %20 = sbr.rel (%p18) target = $region8
    $region5: #{tpu_custom_call.1} parent=1 // loop_body
      %s22 = ssub.s32 %s17, 1
      %s23 = ssub.s32 %s17, 2
      %s24 = sadd.s32 %s17, 1
      %s25 = ssub.s32 %s17, %s24
      %p26 = scmp.eq.s32.totalorder %s25, 0
      %s28 = sadd.s32 %s27, 1
      %s29 = scalar_select %p26, %s27, %s28
      %p32 = pneg %p26
      %p33 = scmp.eq.s32.totalorder %s17, 1
      %p34 = por %p32, %p33
      %p35 = scmp.ne.s32.totalorder %s27, %s30
      %p36 = scmp.eq.s32.totalorder %s17, 0
      %p37 = por %p35, %p36
      %p38 = scmp.ne.s32.totalorder %s27, %s30
      %p39 = scmp.eq.s32.totalorder %s22, 1
      %p40 = por %p38, %p39
      %p41 = scmp.ne.s32.totalorder %s30, %s31
      %p42 = scmp.eq.s32.totalorder %s22, 0
      %p43 = por %p41, %p42
      %p44 = scmp.ne.s32.totalorder %s30, %s31
      %p45 = scmp.eq.s32.totalorder %s23, 1
      %p46 = por %p44, %p45
      %p48 = scmp.ne.s32.totalorder %s31, %s47
      %p49 = scmp.eq.s32.totalorder %s23, 0
      %p50 = por %p48, %p49
      %s51 = ssub.s32 %s17, %s24
      %p52 = scmp.eq.s32.totalorder %s51, 0
      %s54 = sadd.s32 %s53, 1
      %s55 = scalar_select %p52, %s53, %s54
      %p58 = pneg %p52
      %p59 = scmp.eq.s32.totalorder %s17, 1
      %p60 = por %p58, %p59
      %p61 = scmp.ne.s32.totalorder %s53, %s56
      %p62 = scmp.eq.s32.totalorder %s17, 0
      %p63 = por %p61, %p62
      %p64 = scmp.ne.s32.totalorder %s53, %s56
      %p65 = scmp.eq.s32.totalorder %s22, 1
      %p66 = por %p64, %p65
      %p67 = scmp.ne.s32.totalorder %s56, %s57
      %p68 = scmp.eq.s32.totalorder %s22, 0
      %p69 = por %p67, %p68
      %p70 = scmp.ne.s32.totalorder %s56, %s57
      %p71 = scmp.eq.s32.totalorder %s23, 1
      %p72 = por %p70, %p71
      %p74 = scmp.ne.s32.totalorder %s57, %s73
      %p75 = scmp.eq.s32.totalorder %s23, 0
      %p76 = por %p74, %p75
      %s78 = sadd.s32 %s77, 1
      %p81 = scmp.eq.s32.totalorder %s17, 1
      %p82 = scmp.ne.s32.totalorder %s77, %s79
      %p83 = scmp.eq.s32.totalorder %s17, 0
      %p84 = por %p82, %p83
      %p85 = scmp.ne.s32.totalorder %s77, %s79
      %p86 = scmp.eq.s32.totalorder %s22, 1
      %p87 = por %p85, %p86
      %p88 = scmp.ne.s32.totalorder %s79, %s80
      %p89 = scmp.eq.s32.totalorder %s22, 0
      %p90 = por %p88, %p89
      %p91 = scmp.ne.s32.totalorder %s79, %s80
      %p92 = scmp.eq.s32.totalorder %s23, 1
      %p93 = por %p91, %p92
      %p95 = scmp.ne.s32.totalorder %s80, %s94
      %p96 = scmp.eq.s32.totalorder %s23, 0
      %p97 = por %p95, %p96
      %s99 = sadd.s32 %s98, 1
      %p102 = scmp.eq.s32.totalorder %s17, 1
      %p103 = scmp.ne.s32.totalorder %s98, %s100
      %p104 = scmp.eq.s32.totalorder %s17, 0
      %p105 = por %p103, %p104
      %p106 = scmp.ne.s32.totalorder %s98, %s100
      %p107 = scmp.eq.s32.totalorder %s22, 1
      %p108 = por %p106, %p107
      %p109 = scmp.ne.s32.totalorder %s100, %s101
      %p110 = scmp.eq.s32.totalorder %s22, 0
      %p111 = por %p109, %p110
      %p112 = scmp.ne.s32.totalorder %s100, %s101
      %p113 = scmp.eq.s32.totalorder %s23, 1
      %p114 = por %p112, %p113
      %p116 = scmp.ne.s32.totalorder %s101, %s115
      %p117 = scmp.eq.s32.totalorder %s23, 0
      %p118 = por %p116, %p117
      %s120 = sadd.s32 %s119, 1
      %p123 = scmp.eq.s32.totalorder %s17, 1
      %p124 = scmp.ne.s32.totalorder %s119, %s121
      %p125 = scmp.eq.s32.totalorder %s17, 0
      %p126 = por %p124, %p125
      %p127 = scmp.ne.s32.totalorder %s119, %s121
      %p128 = scmp.eq.s32.totalorder %s22, 1
      %p129 = por %p127, %p128
      %p130 = scmp.ne.s32.totalorder %s121, %s122
      %p131 = scmp.eq.s32.totalorder %s22, 0
      %p132 = por %p130, %p131
      %p133 = scmp.ne.s32.totalorder %s121, %s122
      %p134 = scmp.eq.s32.totalorder %s23, 1
      %p135 = por %p133, %p134
      %p137 = scmp.ne.s32.totalorder %s122, %s136
      %p138 = scmp.eq.s32.totalorder %s23, 0
      %p139 = por %p137, %p138
      %s141 = sadd.s32 %s140, 1
      %p144 = scmp.eq.s32.totalorder %s17, 1
      %p145 = scmp.ne.s32.totalorder %s140, %s142
      %p146 = scmp.eq.s32.totalorder %s17, 0
      %p147 = por %p145, %p146
      %p148 = scmp.ne.s32.totalorder %s140, %s142
      %p149 = scmp.eq.s32.totalorder %s22, 1
      %p150 = por %p148, %p149
      %p151 = scmp.ne.s32.totalorder %s142, %s143
      %p152 = scmp.eq.s32.totalorder %s22, 0
      %p153 = por %p151, %p152
      %p154 = scmp.ne.s32.totalorder %s142, %s143
      %p155 = scmp.eq.s32.totalorder %s23, 1
      %p156 = por %p154, %p155
      %p158 = scmp.ne.s32.totalorder %s143, %s157
      %p159 = scmp.eq.s32.totalorder %s23, 0
      %p160 = por %p158, %p159
      %s162 = sadd.s32 %s161, 1
      %p165 = scmp.eq.s32.totalorder %s17, 1
      %p166 = scmp.ne.s32.totalorder %s161, %s163
      %p167 = scmp.eq.s32.totalorder %s17, 0
      %p168 = por %p166, %p167
      %p169 = scmp.ne.s32.totalorder %s161, %s163
      %p170 = scmp.eq.s32.totalorder %s22, 1
      %p171 = por %p169, %p170
      %p172 = scmp.ne.s32.totalorder %s163, %s164
      %p173 = scmp.eq.s32.totalorder %s22, 0
      %p174 = por %p172, %p173
      %p175 = scmp.ne.s32.totalorder %s163, %s164
      %p176 = scmp.eq.s32.totalorder %s23, 1
      %p177 = por %p175, %p176
      %p179 = scmp.ne.s32.totalorder %s164, %s178
      %p180 = scmp.eq.s32.totalorder %s23, 0
      %p181 = por %p179, %p180
      %s183 = sadd.s32 %s182, 1
      %p186 = scmp.eq.s32.totalorder %s17, 1
      %p187 = scmp.ne.s32.totalorder %s182, %s184
      %p188 = scmp.eq.s32.totalorder %s17, 0
      %p189 = por %p187, %p188
      %p190 = scmp.ne.s32.totalorder %s182, %s184
      %p191 = scmp.eq.s32.totalorder %s22, 1
      %p192 = por %p190, %p191
      %p193 = scmp.ne.s32.totalorder %s184, %s185
      %p194 = scmp.eq.s32.totalorder %s22, 0
      %p195 = por %p193, %p194
      %p196 = scmp.ne.s32.totalorder %s184, %s185
      %p197 = scmp.eq.s32.totalorder %s23, 1
      %p198 = por %p196, %p197
      %p200 = scmp.ne.s32.totalorder %s185, %s199
      %p201 = scmp.eq.s32.totalorder %s23, 0
      %p202 = por %p200, %p201
      %s203 = ssub.s32 %s17, %s24
      %p204 = scmp.eq.s32.totalorder %s203, 0
      %s206 = sadd.s32 %s205, 1
      %s207 = scalar_select %p204, %s205, %s206
      %p210 = pneg %p204
      %p211 = scmp.eq.s32.totalorder %s17, 1
      %p212 = por %p210, %p211
      %p213 = scmp.ne.s32.totalorder %s205, %s208
      %p214 = scmp.eq.s32.totalorder %s17, 0
      %p215 = por %p213, %p214
      %p216 = scmp.ne.s32.totalorder %s205, %s208
      %p217 = scmp.eq.s32.totalorder %s22, 1
      %p218 = por %p216, %p217
      %p219 = scmp.ne.s32.totalorder %s208, %s209
      %p220 = scmp.eq.s32.totalorder %s22, 0
      %p221 = por %p219, %p220
      %p222 = scmp.ne.s32.totalorder %s208, %s209
      %p223 = scmp.eq.s32.totalorder %s23, 1
      %p224 = por %p222, %p223
      %p226 = scmp.ne.s32.totalorder %s209, %s225
      %p227 = scmp.eq.s32.totalorder %s23, 0
      %p228 = por %p226, %p227
      %p229 = scmp.le.s32.totalorder 1, %s17
      %p230 = scmp.lt.s32.totalorder %s17, 3
      %p231 = pnand %p229, %p230
      %p232 = pneg %p231
      // Predicated region
      $region9: #{tpu_custom_call.1} parent=5 // pred_check
        _
      $region10: #{tpu_custom_call.1} parent=5 // pred_check_branch
        %234 = sbr.rel (%p231) target = $region12
      $region11: #{tpu_custom_call.1} parent=5 // pred_region
        %s235 = ssub.s32 %s17, 1
        // Predicated region
        $region13: #{tpu_custom_call.1} parent=11 // pred_check
          %p236 = pneg %p90
        $region14: #{tpu_custom_call.1} parent=11 // pred_check_branch
          %238 = sbr.rel (%p236) target = $region16
        $region15: #{tpu_custom_call.1} parent=11 // pred_region
          _
        $region16: #{tpu_custom_call.1} parent=11 // pred_fallthru
          _
        // Predicated region
        $region17: #{tpu_custom_call.1} parent=11 // pred_check
          %p239 = pneg %p111
        $region18: #{tpu_custom_call.1} parent=11 // pred_check_branch
          %241 = sbr.rel (%p239) target = $region20
        $region19: #{tpu_custom_call.1} parent=11 // pred_region
          _
        $region20: #{tpu_custom_call.1} parent=11 // pred_fallthru
          _
        // Predicated region
        $region21: #{tpu_custom_call.1} parent=11 // pred_check
          %p242 = pneg %p132
        $region22: #{tpu_custom_call.1} parent=11 // pred_check_branch
          %244 = sbr.rel (%p242) target = $region24
        $region23: #{tpu_custom_call.1} parent=11 // pred_region
          _
        $region24: #{tpu_custom_call.1} parent=11 // pred_fallthru
          _
        // Predicated region
        $region25: #{tpu_custom_call.1} parent=11 // pred_check
          %p245 = pneg %p153
        $region26: #{tpu_custom_call.1} parent=11 // pred_check_branch
          %247 = sbr.rel (%p245) target = $region28
        $region27: #{tpu_custom_call.1} parent=11 // pred_region
          _
        $region28: #{tpu_custom_call.1} parent=11 // pred_fallthru
          _
        // Predicated region
        $region29: #{tpu_custom_call.1} parent=11 // pred_check
          %p248 = pneg %p174
        $region30: #{tpu_custom_call.1} parent=11 // pred_check_branch
          %250 = sbr.rel (%p248) target = $region32
        $region31: #{tpu_custom_call.1} parent=11 // pred_region
          _
        $region32: #{tpu_custom_call.1} parent=11 // pred_fallthru
          _
        // Predicated region
        $region33: #{tpu_custom_call.1} parent=11 // pred_check
          %p251 = pneg %p195
        $region34: #{tpu_custom_call.1} parent=11 // pred_check_branch
          %253 = sbr.rel (%p251) target = $region36
        $region35: #{tpu_custom_call.1} parent=11 // pred_region
          _
        $region36: #{tpu_custom_call.1} parent=11 // pred_fallthru
          _
      $region12: #{tpu_custom_call.1} parent=5 // pred_fallthru
        _
      %p254 = scmp.lt.s32.totalorder %s17, 2
      // Predicated region
      $region37: #{tpu_custom_call.1} parent=5 // pred_check
        %p255 = pneg %p254
      $region38: #{tpu_custom_call.1} parent=5 // pred_check_branch
        %257 = sbr.rel (%p255) target = $region40
      $region39: #{tpu_custom_call.1} parent=5 // pred_region
        // Predicated region
        $region41: #{tpu_custom_call.1} parent=39 // pred_check
          %p258 = pneg %p37
        $region42: #{tpu_custom_call.1} parent=39 // pred_check_branch
          %260 = sbr.rel (%p258) target = $region44
        $region43: #{tpu_custom_call.1} parent=39 // pred_region
          %p261 = scmp.lt.s32.totalorder %s17, 1
          %s262 = scalar_select %p261, %s17, 1
          %s263 = smul.addr %s262, 8
          %s264 = scalar_lea.vmem %s0, %s263
        $region44: #{tpu_custom_call.1} parent=39 // pred_fallthru
          _
        // Predicated region
        $region45: #{tpu_custom_call.1} parent=39 // pred_check
          %p265 = pneg %p63
        $region46: #{tpu_custom_call.1} parent=39 // pred_check_branch
          %267 = sbr.rel (%p265) target = $region48
        $region47: #{tpu_custom_call.1} parent=39 // pred_region
          %p268 = scmp.lt.s32.totalorder %s17, 1
          %s269 = scalar_select %p268, %s17, 1
          %s270 = smul.addr %s269, 8
          %s271 = scalar_lea.vmem %s1, %s270
        $region48: #{tpu_custom_call.1} parent=39 // pred_fallthru
          _
      $region40: #{tpu_custom_call.1} parent=5 // pred_fallthru
        _
      %p272 = scmp.le.s32.totalorder 1, %s17
      %p273 = scmp.lt.s32.totalorder %s17, 3
      %p274 = pnand %p272, %p273
      %p275 = pneg %p274
      // Predicated region
      $region49: #{tpu_custom_call.1} parent=5 // pred_check
        _
      $region50: #{tpu_custom_call.1} parent=5 // pred_check_branch
        %277 = sbr.rel (%p274) target = $region52
      $region51: #{tpu_custom_call.1} parent=5 // pred_region
        %s278 = ssub.s32 %s17, 1
        %p279 = scmp.lt.s32.totalorder %s22, 1
        %s280 = scalar_select %p279, %s22, 1
        %s281 = smul.addr %s280, 8
        %s282 = scalar_lea.vmem %s0, %s281
        %p283 = pneg %p43
        %p284 = pneg %p40
        %p285 = scmp.lt.s32.totalorder %s22, 1
        %s286 = scalar_select %p285, %s22, 1
        %s287 = smul.addr %s286, 8
        %s288 = scalar_lea.vmem %s1, %s287
        %p289 = pneg %p69
        %p290 = pneg %p66
        %p291 = pneg %p90
        %p292 = pneg %p87
        %p293 = pneg %p111
        %p294 = pneg %p108
        %p295 = pneg %p132
        %p296 = pneg %p129
        %p297 = pneg %p153
        %p298 = pneg %p150
        %p299 = pneg %p174
        %p300 = pneg %p171
        %p301 = pneg %p195
        %p302 = pneg %p192
        %p303 = pneg %p221
        %p304 = pneg %p218
        %s305 = sand.u32 %s208, 1
        %s306 = scalar_lea.sflag [#allocation3], %s305
        %s307 = sand.u32 %s208, 1
        %s308 = smul.addr %s307, 8
        %s309 = scalar_lea.vmem [#allocation2], %s308
        %p310 = scmp.lt.s32.totalorder %s22, 1
        %s311 = scalar_select %p310, %s22, 1
        %s312 = smul.addr %s311, 8
        %s313 = scalar_lea.vmem %s0, %s312
        %p314 = scmp.lt.s32.totalorder %s22, 1
        %s315 = scalar_select %p314, %s22, 1
        %s316 = smul.addr %s315, 8
        %s317 = scalar_lea.vmem %s1, %s316
        %v318 = vld [vmem:[%s313] sm:$0xff]
        %v319 = vld [vmem:[%s317] sm:$0xff]
        %v320 = vld [vmem:[%s2] sm:$0xff]
        %v321 = vld [vmem:[%s2 + $0x8] sm:$0xff]
        %v322 = vld [vmem:[%s2 + $0x10] sm:$0xff]
        %v323 = vld [vmem:[%s2 + $0x18] sm:$0xff]
        %v324 = vld [vmem:[%s3] sm:$0xff]
        %v325 = vld [vmem:[%s3 + $0x8] sm:$0xff]
        %vm326 = vcmask 130048
        %v328 = vsel %vm326, %v319, 0
        %330 = vmatprep.subr.mxu0 0.0
        %331 = vmatpush1.msra.mxu0 0.0
        %332 = vmatprep.subr.mxu0 0.0
        %333 = vmatpush1.msra.mxu0 0.0
        %334 = vmatprep.subr.mxu0 0.0
        %335 = vmatpush1.msra.mxu0 0.0
        %336 = vmatprep.subr.mxu0 0.0
        %337 = vmatpush1.msra.mxu0 0.0
        %338 = vmatprep.subr.mxu0 0.0
        %339 = vmatpush1.msra.mxu0 0.0
        %340 = vmatprep.subr.mxu0 0.0
        %341 = vmatpush1.msra.mxu0 0.0
        %342 = vmatprep.subr.mxu0 0.0
        %343 = vmatpush1.msra.mxu0 0.0
        %344 = vmatprep.subr.mxu0 0.0
        %345 = vmatpush1.msra.mxu0 0.0
        %346 = vmatprep.subr.mxu0 0.0
        %347 = vmatpush1.msra.mxu0 0.0
        %348 = vmatprep.subr.mxu0 0.0
        %349 = vmatpush1.msra.mxu0 0.0
        %350 = vmatprep.subr.mxu0 0.0
        %351 = vmatpush1.msra.mxu0 0.0
        %352 = vmatprep.subr.mxu0 0.0
        %353 = vmatpush1.msra.mxu0 0.0
        %354 = vmatprep.subr.mxu0 0.0
        %355 = vmatpush1.msra.mxu0 0.0
        %356 = vmatprep.subr.mxu0 0.0
        %357 = vmatpush1.msra.mxu0 0.0
        %358 = vmatprep.subr.mxu0 0.0
        %359 = vmatpush1.msra.mxu0 %v325
        %360 = vmatprep.subr.mxu0 0.0
        %361 = vmatpush1.msra.mxu0 %v324
        %362 = vmatprep.subr.mxu0 0.0
        %363 = vmatpush2.msra.mxu0 0.0
        %364 = vmatprep.subr.mxu0 0.0
        %365 = vmatpush2.msra.mxu0 0.0
        %366 = vmatprep.subr.mxu0 0.0
        %367 = vmatpush2.msra.mxu0 0.0
        %368 = vmatprep.subr.mxu0 0.0
        %369 = vmatpush2.msra.mxu0 0.0
        %370 = vmatprep.subr.mxu0 0.0
        %371 = vmatpush2.msra.mxu0 0.0
        %372 = vmatprep.subr.mxu0 0.0
        %373 = vmatpush2.msra.mxu0 0.0
        %374 = vmatprep.subr.mxu0 0.0
        %375 = vmatpush2.msra.mxu0 0.0
        %376 = vmatprep.subr.mxu0 0.0
        %377 = vmatpush2.msra.mxu0 0.0
        %378 = vmatprep.subr.mxu0 0.0
        %379 = vmatpush2.msra.mxu0 0.0
        %380 = vmatprep.subr.mxu0 0.0
        %381 = vmatpush2.msra.mxu0 0.0
        %382 = vmatprep.subr.mxu0 0.0
        %383 = vmatpush2.msra.mxu0 0.0
        %384 = vmatprep.subr.mxu0 0.0
        %385 = vmatpush2.msra.mxu0 0.0
        %386 = vmatprep.subr.mxu0 0.0
        %387 = vmatpush2.msra.mxu0 0.0
        %388 = vmatprep.subr.mxu0 0.0
        %389 = vmatpush2.msra.mxu0 0.0
        %390 = vmatprep.subr.mxu0 0.0
        %391 = vmatpush2.msra.mxu0 0.0
        %392 = vmatprep.subr.mxu0 0.0
        %393 = vmatpush2.msra.mxu0 0.0
        %394 = vmatprep.mubr.f32.mxu0 0.0
        %395 = vmatmul.mubr.f32.gmra.mxu0 %v328
        %v396 = vpop.f32.mrf.mxu0
        %v397 = vadd.f32 0.0, %v396
        %v398 = vpop.f32.mrf.mxu0
        %399 = vdwg.mxu0
        %vm400 = vcmask 261120
        %v402 = vsel %vm400, %v318, 0
        %404 = vmatprep.subr.mxu0 0.0
        %405 = vmatpush1.msra.mxu0 0.0
        %406 = vmatprep.subr.mxu0 0.0
        %407 = vmatpush1.msra.mxu0 0.0
        %408 = vmatprep.subr.mxu0 0.0
        %409 = vmatpush1.msra.mxu0 0.0
        %410 = vmatprep.subr.mxu0 0.0
        %411 = vmatpush1.msra.mxu0 0.0
        %412 = vmatprep.subr.mxu0 0.0
        %413 = vmatpush1.msra.mxu0 0.0
        %414 = vmatprep.subr.mxu0 0.0
        %415 = vmatpush1.msra.mxu0 0.0
        %416 = vmatprep.subr.mxu0 0.0
        %417 = vmatpush1.msra.mxu0 0.0
        %418 = vmatprep.subr.mxu0 0.0
        %419 = vmatpush1.msra.mxu0 0.0
        %420 = vmatprep.subr.mxu0 0.0
        %421 = vmatpush1.msra.mxu0 0.0
        %422 = vmatprep.subr.mxu0 0.0
        %423 = vmatpush1.msra.mxu0 0.0
        %424 = vmatprep.subr.mxu0 0.0
        %425 = vmatpush1.msra.mxu0 0.0
        %426 = vmatprep.subr.mxu0 0.0
        %427 = vmatpush1.msra.mxu0 0.0
        %428 = vmatprep.subr.mxu0 0.0
        %429 = vmatpush1.msra.mxu0 %v323
        %430 = vmatprep.subr.mxu0 0.0
        %431 = vmatpush1.msra.mxu0 %v322
        %432 = vmatprep.subr.mxu0 0.0
        %433 = vmatpush1.msra.mxu0 %v321
        %434 = vmatprep.subr.mxu0 0.0
        %435 = vmatpush1.msra.mxu0 %v320
        %436 = vmatprep.subr.mxu0 0.0
        %437 = vmatpush2.msra.mxu0 0.0
        %438 = vmatprep.subr.mxu0 0.0
        %439 = vmatpush2.msra.mxu0 0.0
        %440 = vmatprep.subr.mxu0 0.0
        %441 = vmatpush2.msra.mxu0 0.0
        %442 = vmatprep.subr.mxu0 0.0
        %443 = vmatpush2.msra.mxu0 0.0
        %444 = vmatprep.subr.mxu0 0.0
        %445 = vmatpush2.msra.mxu0 0.0
        %446 = vmatprep.subr.mxu0 0.0
        %447 = vmatpush2.msra.mxu0 0.0
        %448 = vmatprep.subr.mxu0 0.0
        %449 = vmatpush2.msra.mxu0 0.0
        %450 = vmatprep.subr.mxu0 0.0
        %451 = vmatpush2.msra.mxu0 0.0
        %452 = vmatprep.subr.mxu0 0.0
        %453 = vmatpush2.msra.mxu0 0.0
        %454 = vmatprep.subr.mxu0 0.0
        %455 = vmatpush2.msra.mxu0 0.0
        %456 = vmatprep.subr.mxu0 0.0
        %457 = vmatpush2.msra.mxu0 0.0
        %458 = vmatprep.subr.mxu0 0.0
        %459 = vmatpush2.msra.mxu0 0.0
        %460 = vmatprep.subr.mxu0 0.0
        %461 = vmatpush2.msra.mxu0 0.0
        %462 = vmatprep.subr.mxu0 0.0
        %463 = vmatpush2.msra.mxu0 0.0
        %464 = vmatprep.subr.mxu0 0.0
        %465 = vmatpush2.msra.mxu0 0.0
        %466 = vmatprep.subr.mxu0 0.0
        %467 = vmatpush2.msra.mxu0 0.0
        %468 = vmatprep.mubr.f32.mxu0 0.0
        %469 = vmatmul.mubr.f32.gmra.mxu0 %v402
        %v470 = vpop.f32.mrf.mxu0
        %v471 = vadd.f32 %v397, %v470
        %v472 = vpop.f32.mrf.mxu0
        %473 = vdwg.mxu0
        %v474 = vld [vmem:[%s4] sm:$0x1]
        %v476 = vlaneseq
        %v477 = vshrl.u32 %v476, 7
        %v478 = vsub.s32 0, %v477
        %v479 = vrot.slane %v474, %v478
        %v481 = vadd.f32 %v471, %v479
        %v482 = vmax.f32 %v481, 0.0
        %v483 = vld [vmem:[%s5] sm:$0xff]
        %v484 = vld [vmem:[%s5 + $0x8] sm:$0xff]
        %v485 = vld [vmem:[%s5 + $0x10] sm:$0xff]
        %v486 = vld [vmem:[%s5 + $0x18] sm:$0xff]
        %v487 = vld [vmem:[%s5 + $0x20] sm:$0xff]
        %v488 = vld [vmem:[%s5 + $0x28] sm:$0xff]
        %v489 = vld [vmem:[%s5 + $0x30] sm:$0xff]
        %v490 = vld [vmem:[%s5 + $0x38] sm:$0xff]
        %v491 = vld [vmem:[%s5 + $0x40] sm:$0xff]
        %v492 = vld [vmem:[%s5 + $0x48] sm:$0xff]
        %v493 = vld [vmem:[%s5 + $0x50] sm:$0xff]
        %v494 = vld [vmem:[%s5 + $0x58] sm:$0xff]
        %v495 = vld [vmem:[%s6] sm:$0x1]
        %v497 = vlaneseq
        %v498 = vshrl.u32 %v497, 7
        %v499 = vsub.s32 0, %v498
        %v500 = vrot.slane %v495, %v499
        %vm502 = vcmask 785408
        %v504 = vsel %vm502, %v482, 0
        %506 = vmatprep.subr.mxu0 0.0
        %507 = vmatpush1.msra.mxu0 0.0
        %508 = vmatprep.subr.mxu0 0.0
        %509 = vmatpush1.msra.mxu0 0.0
        %510 = vmatprep.subr.mxu0 0.0
        %511 = vmatpush1.msra.mxu0 0.0
        %512 = vmatprep.subr.mxu0 0.0
        %513 = vmatpush1.msra.mxu0 0.0
        %514 = vmatprep.subr.mxu0 0.0
        %515 = vmatpush1.msra.mxu0 %v494
        %516 = vmatprep.subr.mxu0 0.0
        %517 = vmatpush1.msra.mxu0 %v493
        %518 = vmatprep.subr.mxu0 0.0
        %519 = vmatpush1.msra.mxu0 %v492
        %520 = vmatprep.subr.mxu0 0.0
        %521 = vmatpush1.msra.mxu0 %v491
        %522 = vmatprep.subr.mxu0 0.0
        %523 = vmatpush1.msra.mxu0 %v490
        %524 = vmatprep.subr.mxu0 0.0
        %525 = vmatpush1.msra.mxu0 %v489
        %526 = vmatprep.subr.mxu0 0.0
        %527 = vmatpush1.msra.mxu0 %v488
        %528 = vmatprep.subr.mxu0 0.0
        %529 = vmatpush1.msra.mxu0 %v487
        %530 = vmatprep.subr.mxu0 0.0
        %531 = vmatpush1.msra.mxu0 %v486
        %532 = vmatprep.subr.mxu0 0.0
        %533 = vmatpush1.msra.mxu0 %v485
        %534 = vmatprep.subr.mxu0 0.0
        %535 = vmatpush1.msra.mxu0 %v484
        %536 = vmatprep.subr.mxu0 0.0
        %537 = vmatpush1.msra.mxu0 %v483
        %538 = vmatprep.subr.mxu0 0.0
        %539 = vmatpush2.msra.mxu0 0.0
        %540 = vmatprep.subr.mxu0 0.0
        %541 = vmatpush2.msra.mxu0 0.0
        %542 = vmatprep.subr.mxu0 0.0
        %543 = vmatpush2.msra.mxu0 0.0
        %544 = vmatprep.subr.mxu0 0.0
        %545 = vmatpush2.msra.mxu0 0.0
        %546 = vmatprep.subr.mxu0 0.0
        %547 = vmatpush2.msra.mxu0 0.0
        %548 = vmatprep.subr.mxu0 0.0
        %549 = vmatpush2.msra.mxu0 0.0
        %550 = vmatprep.subr.mxu0 0.0
        %551 = vmatpush2.msra.mxu0 0.0
        %552 = vmatprep.subr.mxu0 0.0
        %553 = vmatpush2.msra.mxu0 0.0
        %554 = vmatprep.subr.mxu0 0.0
        %555 = vmatpush2.msra.mxu0 0.0
        %556 = vmatprep.subr.mxu0 0.0
        %557 = vmatpush2.msra.mxu0 0.0
        %558 = vmatprep.subr.mxu0 0.0
        %559 = vmatpush2.msra.mxu0 0.0
        %560 = vmatprep.subr.mxu0 0.0
        %561 = vmatpush2.msra.mxu0 0.0
        %562 = vmatprep.subr.mxu0 0.0
        %563 = vmatpush2.msra.mxu0 0.0
        %564 = vmatprep.subr.mxu0 0.0
        %565 = vmatpush2.msra.mxu0 0.0
        %566 = vmatprep.subr.mxu0 0.0
        %567 = vmatpush2.msra.mxu0 0.0
        %568 = vmatprep.subr.mxu0 0.0
        %569 = vmatpush2.msra.mxu0 0.0
        %570 = vmatprep.mubr.f32.mxu0 0.0
        %571 = vmatmul.mubr.f32.gmra.mxu0 %v504
        %v572 = vpop.f32.mrf.mxu0
        %v573 = vadd.f32 %v500, %v572
        %v574 = vpop.f32.mrf.mxu0
        %575 = vdwg.mxu0
        %v576 = vmax.f32 %v573, 0.0
        %v577 = vld [vmem:[%s7] sm:$0xff]
        %v578 = vld [vmem:[%s7 + $0x8] sm:$0xff]
        %v579 = vld [vmem:[%s7 + $0x10] sm:$0xff]
        %v580 = vld [vmem:[%s7 + $0x18] sm:$0xff]
        %v581 = vld [vmem:[%s7 + $0x20] sm:$0xff]
        %v582 = vld [vmem:[%s7 + $0x28] sm:$0xff]
        %v583 = vld [vmem:[%s7 + $0x30] sm:$0xff]
        %v584 = vld [vmem:[%s7 + $0x38] sm:$0xff]
        %vm585 = vcmask 523264
        %v587 = vsel %vm585, %v576, 0
        %589 = vmatprep.subr.mxu0 0.0
        %590 = vmatpush1.msra.mxu0 0.0
        %591 = vmatprep.subr.mxu0 0.0
        %592 = vmatpush1.msra.mxu0 0.0
        %593 = vmatprep.subr.mxu0 0.0
        %594 = vmatpush1.msra.mxu0 0.0
        %595 = vmatprep.subr.mxu0 0.0
        %596 = vmatpush1.msra.mxu0 0.0
        %597 = vmatprep.subr.mxu0 0.0
        %598 = vmatpush1.msra.mxu0 0.0
        %599 = vmatprep.subr.mxu0 0.0
        %600 = vmatpush1.msra.mxu0 0.0
        %601 = vmatprep.subr.mxu0 0.0
        %602 = vmatpush1.msra.mxu0 0.0
        %603 = vmatprep.subr.mxu0 0.0
        %604 = vmatpush1.msra.mxu0 0.0
        %605 = vmatprep.subr.mxu0 0.0
        %606 = vmatpush1.msra.mxu0 %v584
        %607 = vmatprep.subr.mxu0 0.0
        %608 = vmatpush1.msra.mxu0 %v583
        %609 = vmatprep.subr.mxu0 0.0
        %610 = vmatpush1.msra.mxu0 %v582
        %611 = vmatprep.subr.mxu0 0.0
        %612 = vmatpush1.msra.mxu0 %v581
        %613 = vmatprep.subr.mxu0 0.0
        %614 = vmatpush1.msra.mxu0 %v580
        %615 = vmatprep.subr.mxu0 0.0
        %616 = vmatpush1.msra.mxu0 %v579
        %617 = vmatprep.subr.mxu0 0.0
        %618 = vmatpush1.msra.mxu0 %v578
        %619 = vmatprep.subr.mxu0 0.0
        %620 = vmatpush1.msra.mxu0 %v577
        %621 = vmatprep.subr.mxu0 0.0
        %622 = vmatpush2.msra.mxu0 0.0
        %623 = vmatprep.subr.mxu0 0.0
        %624 = vmatpush2.msra.mxu0 0.0
        %625 = vmatprep.subr.mxu0 0.0
        %626 = vmatpush2.msra.mxu0 0.0
        %627 = vmatprep.subr.mxu0 0.0
        %628 = vmatpush2.msra.mxu0 0.0
        %629 = vmatprep.subr.mxu0 0.0
        %630 = vmatpush2.msra.mxu0 0.0
        %631 = vmatprep.subr.mxu0 0.0
        %632 = vmatpush2.msra.mxu0 0.0
        %633 = vmatprep.subr.mxu0 0.0
        %634 = vmatpush2.msra.mxu0 0.0
        %635 = vmatprep.subr.mxu0 0.0
        %636 = vmatpush2.msra.mxu0 0.0
        %637 = vmatprep.subr.mxu0 0.0
        %638 = vmatpush2.msra.mxu0 0.0
        %639 = vmatprep.subr.mxu0 0.0
        %640 = vmatpush2.msra.mxu0 0.0
        %641 = vmatprep.subr.mxu0 0.0
        %642 = vmatpush2.msra.mxu0 0.0
        %643 = vmatprep.subr.mxu0 0.0
        %644 = vmatpush2.msra.mxu0 0.0
        %645 = vmatprep.subr.mxu0 0.0
        %646 = vmatpush2.msra.mxu0 0.0
        %647 = vmatprep.subr.mxu0 0.0
        %648 = vmatpush2.msra.mxu0 0.0
        %649 = vmatprep.subr.mxu0 0.0
        %650 = vmatpush2.msra.mxu0 0.0
        %651 = vmatprep.subr.mxu0 0.0
        %652 = vmatpush2.msra.mxu0 0.0
        %653 = vmatprep.mubr.f32.mxu0 0.0
        %654 = vmatmul.mubr.f32.gmra.mxu0 %v587
        %v655 = vpop.f32.mrf.mxu0
        %v656 = vadd.f32 0.0, %v655
        %v657 = vpop.f32.mrf.mxu0
        %658 = vdwg.mxu0
        %v659 = vmul.f32 %v656, 0.5
        %v660 = vtanh.pop %v659
        %v661 = vmul.f32 %v660, 0.5
        %v662 = vadd.f32 %v661, 0.5
        %664 = vrot.lane.b32.xlu0 %v662, 96
        %v665 = vpop.permute.xlu0 %664
        %v667 = vmul.f32 %v656, %v665
        %669 = vrot.lane.b32.xlu0 %v667, 32
        %v670 = vpop.permute.xlu0 %669
        %v672 = vsel %vm400, %v318, %v670
        %673 = vst.msk [vmem:[%s309] sm:$0xff] %vm585, %v672
        %s674 = sand.u32 %s208, 1
        %s675 = scalar_lea.sflag [#allocation3], %s674
        %s676 = sand.u32 %s208, 1
        %s677 = smul.addr %s676, 8
        %s678 = scalar_lea.vmem [#allocation2], %s677
        // Predicated region
        $region53: #{tpu_custom_call.1} parent=51 // pred_check
          %p679 = pneg %p218
        $region54: #{tpu_custom_call.1} parent=51 // pred_check_branch
          %681 = sbr.rel (%p679) target = $region56
        $region55: #{tpu_custom_call.1} parent=51 // pred_region
          %s683 = ssub.s32 128, 128
          %684 = vsyncadd %s675, %s683
          %s685 = smul.addr %s22, 128
          %s686 = scalar_lea.hbm %s8, %s685
          %s688 = sshll.u32 %s678, 4
          %s689 = int_to_ptr.vmem [resolvable:$true] %s688
          %691 = dma.vmem_to_hbm [thread:$0]  %s689, 128, %s686, %s675
        $region56: #{tpu_custom_call.1} parent=51 // pred_fallthru
          _
      $region52: #{tpu_custom_call.1} parent=5 // pred_fallthru
        _
      %p692 = scmp.le.s32.totalorder 2, %s17
      // Predicated region
      $region57: #{tpu_custom_call.1} parent=5 // pred_check
        %p693 = pneg %p692
      $region58: #{tpu_custom_call.1} parent=5 // pred_check_branch
        %695 = sbr.rel (%p693) target = $region60
      $region59: #{tpu_custom_call.1} parent=5 // pred_region
        %s696 = ssub.s32 %s17, 2
        // Predicated region
        $region61: #{tpu_custom_call.1} parent=59 // pred_check
          %p697 = pneg %p224
        $region62: #{tpu_custom_call.1} parent=59 // pred_check_branch
          %699 = sbr.rel (%p697) target = $region64
        $region63: #{tpu_custom_call.1} parent=59 // pred_region
          %s700 = sand.u32 %s209, 1
          %s701 = scalar_lea.sflag [#allocation3], %s700
          %s702 = sand.u32 %s209, 1
          %s703 = smul.addr %s702, 8
          %s704 = scalar_lea.vmem [#allocation2], %s703
          %705 = dma.done %s701, 128
        $region64: #{tpu_custom_call.1} parent=59 // pred_fallthru
          _
      $region60: #{tpu_custom_call.1} parent=5 // pred_fallthru
        _
    $region6: #{tpu_custom_call.1} parent=1 // loop_footer
      %s21 = sadd.s32 1, %s17
    $region7: #{tpu_custom_call.1} parent=1 // loop_footer_branch
      %16 = sbr.rel target = $region3
    $region8: #{tpu_custom_call.1} parent=1 // loop_exit
      _
    %706 = vsyncpa [#allocation3], 1
    %s707 = scalar_lea.sflag [#allocation3], 1
    %708 = vsyncpa %s707, 1

</llo_original>
